<compile_context>
chip_gen: v5e
topology: v5e:2x2
jax: 0.10.0
libtpu: 0.0.40
codegen_flags: <defaults>
</compile_context>

<pallas_src>
import functools

import jax
import jax.numpy as jnp
from jax.experimental import pallas as pl
from jax.experimental.pallas import tpu as pltpu

_LANES = 128


def _round_up(x, m):
    return (x + m - 1) // m * m


def _cdiv(a, b):
    return (a + b - 1) // b


def _lane_tree_reduce(x, width=_LANES):
    """Sum (c, m*width) -> (c, width) via a pairwise tree of static,
    128-lane-aligned slices (pure VPU adds, no cross-lane XLU work)."""
    m = x.shape[-1] // width
    chunks = [x[:, i * width:(i + 1) * width] for i in range(m)]
    while len(chunks) > 1:
        nxt = [a + b for a, b in zip(chunks[0::2], chunks[1::2])]
        if len(chunks) % 2:
            nxt.append(chunks[-1])
        chunks = nxt
    return chunks[0]


def _f1_partials_kernel(logits_ref, labels_ref, tp_ref, ps_ref, cnt_ref, *,
                        n, c, tile_n, tiles_per_split):
    s = pl.program_id(0)          # parallel split (megacore on v7x)
    t = pl.program_id(1)          # sequential reduce axis

    @pl.when(t == 0)
    def _init():
        tp_ref[...] = jnp.zeros_like(tp_ref)
        ps_ref[...] = jnp.zeros_like(ps_ref)
        cnt_ref[...] = jnp.zeros_like(cnt_ref)

    # Lane-validity mask: covers both the 128-lane rounding pad and whole
    # padding tiles introduced by the 2-way core split.
    lane = jax.lax.broadcasted_iota(jnp.int32, (1, tile_n), 1)
    base = (s * tiles_per_split + t) * tile_n
    valid = (base + lane) < n                            # (1, tile_n) bool

    # Host pads logits with 0.0 and labels with -1, so no (c, tile_n) input
    # masks are needed (per perf review).
    logits = logits_ref[...].astype(jnp.float32)         # (c, tile_n)
    labels = labels_ref[...]                             # (1, tile_n) i32

    # Softmax over the class (sublane) axis -- only c sublanes of XLU work.
    m = jnp.max(logits, axis=0, keepdims=True)           # (1, tile_n)
    e = jnp.exp(logits - m)                              # (c, tile_n)
    ssum = jnp.sum(e, axis=0, keepdims=True)             # (1, tile_n)
    # Fold the lane mask into the single-sublane reciprocal: pad lanes get
    # probs == 0 and therefore contribute nothing to any partial sum.
    inv = jnp.where(valid, pl.reciprocal(ssum), 0.0)     # (1, tile_n)
    probs = e * inv                                      # (c, tile_n)

    cls = jax.lax.broadcasted_iota(jnp.int32, (c, tile_n), 0)
    onehot = jnp.where(cls == labels, 1.0, 0.0)          # pad labels=-1 -> 0

    # Per-tile lane tree-reduction to (c, 128), then one tiny RMW of the
    # resident output blocks (accumulators live in the output, no scratch).
    tp_ref[...] += _lane_tree_reduce(onehot * probs)[None]
    ps_ref[...] += _lane_tree_reduce(probs)[None]
    cnt_ref[...] += _lane_tree_reduce(onehot)[None]


def f1_loss(y_pred, y_true, classes=3, epsilon=1e-7,
            max_tile_n=32768, num_splits=2):
    """Pallas equivalent of F1Loss.forward(y_pred, y_true)."""
    assert y_pred.ndim == 2
    assert y_true.ndim == 1
    n, c = y_pred.shape
    assert c == classes

    # Tiling: num_splits (parallel) x tiles_per_split (arbitrary) lane tiles,
    # sized so padding is minimal and tile_n is a multiple of 128, capped at
    # max_tile_n (keeps double-buffered inputs well inside v5e scoped VMEM).
    tiles_per_split = max(1, _cdiv(n, num_splits * max_tile_n))
    tile_n = max(_LANES,
                 _round_up(_cdiv(n, num_splits * tiles_per_split), _LANES))
    n_pad = num_splits * tiles_per_split * tile_n

    # Layout plumbing only (single fused copy): samples on lanes, classes on
    # sublanes, logits padded with 0.0 and labels with -1 so the kernel needs
    # no input masks.  bf16 logits are kept bf16 and upcast inside the kernel.
    if y_pred.dtype not in (jnp.float32, jnp.bfloat16):
        y_pred = y_pred.astype(jnp.float32)
    logits_t = jnp.pad(y_pred.T, ((0, 0), (0, n_pad - n)))          # (c, n_pad)
    labels2d = jnp.pad(jnp.asarray(y_true, jnp.int32).reshape(1, n),
                       ((0, 0), (0, n_pad - n)),
                       constant_values=-1)                          # (1, n_pad)

    kernel = functools.partial(_f1_partials_kernel, n=n, c=c, tile_n=tile_n,
                               tiles_per_split=tiles_per_split)
    part_shape = jax.ShapeDtypeStruct((num_splits, c, _LANES), jnp.float32)
    part_spec = pl.BlockSpec((1, c, _LANES), lambda s, t: (s, 0, 0))

    tp_p, ps_p, cnt_p = pl.pallas_call(
        kernel,
        out_shape=(part_shape, part_shape, part_shape),
        grid=(num_splits, tiles_per_split),
        in_specs=[
            pl.BlockSpec((c, tile_n),
                         lambda s, t: (0, s * tiles_per_split + t)),
            pl.BlockSpec((1, tile_n),
                         lambda s, t: (0, s * tiles_per_split + t)),
        ],
        out_specs=(part_spec, part_spec, part_spec),
        compiler_params=pltpu.CompilerParams(
            dimension_semantics=("parallel", "arbitrary"),
            vmem_limit_bytes=32 * 1024 * 1024),
        cost_estimate=pl.CostEstimate(
            flops=14 * n_pad * c,
            transcendentals=n_pad * c + n_pad,
            bytes_accessed=(logits_t.dtype.itemsize * n_pad * c
                            + 4 * n_pad
                            + 3 * 4 * num_splits * c * _LANES)),
    )(logits_t, labels2d)

    # Tiny finalize on (c,)-sized vectors (runs as plain XLA; negligible).
    eps = jnp.float32(epsilon)
    tp = jnp.sum(tp_p, axis=(0, 2))
    ps = jnp.sum(ps_p, axis=(0, 2))
    cnt = jnp.sum(cnt_p, axis=(0, 2))
    fp = ps - tp                      # == sum((1 - onehot) * probs)
    fn = cnt - tp                     # == sum(onehot * (1 - probs))
    precision = tp / (tp + fp + eps)
    recall = tp / (tp + fn + eps)
    f1 = 2.0 * (precision * recall) / (precision + recall + eps)
    f1 = jnp.clip(f1, eps, 1.0 - eps)
    return 1.0 - jnp.mean(f1)


def _f1_loss_ref(y_pred, y_true, classes=3, epsilon=1e-7):
    y_true_oh = jax.nn.one_hot(y_true, classes, dtype=jnp.float32)
    p = jax.nn.softmax(y_pred.astype(jnp.float32), axis=1)
    tp = jnp.sum(y_true_oh * p, axis=0)
    fp = jnp.sum((1.0 - y_true_oh) * p, axis=0)
    fn = jnp.sum(y_true_oh * (1.0 - p), axis=0)
    precision = tp / (tp + fp + epsilon)
    recall = tp / (tp + fn + epsilon)
    f1 = 2.0 * (precision * recall) / (precision + recall + epsilon)
    f1 = jnp.clip(f1, epsilon, 1.0 - epsilon)
    return 1.0 - jnp.mean(f1)


if __name__ == "__main__":
    classes = 3
    key = jax.random.PRNGKey(0)

    # Case 1: tiny ragged batch (exercises lane masks + all-pad split tiles).
    k1, k2, k3, k4 = jax.random.split(key, 4)
    y_pred_a = jax.random.normal(k1, (10, classes), dtype=jnp.float32)
    y_true_a = jax.random.randint(k2, (10,), 0, classes, dtype=jnp.int32)
    loss_a = f1_loss(y_pred_a, y_true_a, classes=classes, epsilon=1e-7)
    jax.block_until_ready(loss_a)
    ref_a = _f1_loss_ref(y_pred_a, y_true_a, classes=classes, epsilon=1e-7)
    assert jnp.allclose(loss_a, ref_a, atol=1e-5, rtol=1e-5), (loss_a, ref_a)

    # Case 2: larger batch (exercises the lane tree reduction + both splits).
    y_pred_b = jax.random.normal(k3, (1000, classes), dtype=jnp.float32)
    y_true_b = jax.random.randint(k4, (1000,), 0, classes, dtype=jnp.int32)
    loss_b = f1_loss(y_pred_b, y_true_b, classes=classes, epsilon=1e-7)
    jax.block_until_ready(loss_b)
    ref_b = _f1_loss_ref(y_pred_b, y_true_b, classes=classes, epsilon=1e-7)
    assert jnp.allclose(loss_b, ref_b, atol=1e-5, rtol=1e-5), (loss_b, ref_b)

    print("KERNEL_OK")
</pallas_src>

<mosaic_0001>
module attributes {stable_mosaic.version = 11 : i64} {
  func.func @_f1_partials_kernel(%arg0: i32, %arg1: i32, %arg2: memref<3x128xf32, #tpu.memory_space<vmem>>, %arg3: memref<1x128xi32, #tpu.memory_space<vmem>>, %arg4: memref<1x3x128xf32, #tpu.memory_space<vmem>>, %arg5: memref<1x3x128xf32, #tpu.memory_space<vmem>>, %arg6: memref<1x3x128xf32, #tpu.memory_space<vmem>>) attributes {dimension_semantics = [#tpu.dimension_semantics<parallel>, #tpu.dimension_semantics<arbitrary>], iteration_bounds = array<i64: 2, 1>, scalar_prefetch = 0 : i64, scratch_operands = 0 : i64, tpu.core_type = #tpu.core_type<tc>, window_params = [{transform_indices = @transform_0, window_bounds = array<i64: 3, 128>}, {transform_indices = @transform_1, window_bounds = array<i64: 1, 128>}, {transform_indices = @transform_2, window_bounds = array<i64: 1, 3, 128>}, {transform_indices = @transform_3, window_bounds = array<i64: 1, 3, 128>}, {transform_indices = @transform_4, window_bounds = array<i64: 1, 3, 128>}]} {
    %c0_i32 = arith.constant 0 : i32
    %0 = arith.cmpi eq, %arg1, %c0_i32 : i32
    %1 = arith.extui %0 : i1 to i32
    %c0_i32_0 = arith.constant 0 : i32
    %2 = arith.cmpi ne, %1, %c0_i32_0 : i32
    scf.if %2 {
      %cst_26 = arith.constant 0.000000e+00 : f32
      %44 = vector.broadcast %cst_26 : f32 to vector<1x3x128xf32>
      %c0_27 = arith.constant 0 : index
      %c0_28 = arith.constant 0 : index
      %c0_29 = arith.constant 0 : index
      %45 = vector.load %arg4[%c0_27, %c0_28, %c0_29] : memref<1x3x128xf32, #tpu.memory_space<vmem>>, vector<1x3x128xf32>
      tpu.vector_store %arg4[%c0_27, %c0_28, %c0_29], %44 {strides = array<i32>} : memref<1x3x128xf32, #tpu.memory_space<vmem>>, vector<1x3x128xf32>,
      %cst_30 = arith.constant 0.000000e+00 : f32
      %46 = vector.broadcast %cst_30 : f32 to vector<1x3x128xf32>
      %c0_31 = arith.constant 0 : index
      %c0_32 = arith.constant 0 : index
      %c0_33 = arith.constant 0 : index
      %47 = vector.load %arg5[%c0_31, %c0_32, %c0_33] : memref<1x3x128xf32, #tpu.memory_space<vmem>>, vector<1x3x128xf32>
      tpu.vector_store %arg5[%c0_31, %c0_32, %c0_33], %46 {strides = array<i32>} : memref<1x3x128xf32, #tpu.memory_space<vmem>>, vector<1x3x128xf32>,
      %cst_34 = arith.constant 0.000000e+00 : f32
      %48 = vector.broadcast %cst_34 : f32 to vector<1x3x128xf32>
      %c0_35 = arith.constant 0 : index
      %c0_36 = arith.constant 0 : index
      %c0_37 = arith.constant 0 : index
      %49 = vector.load %arg6[%c0_35, %c0_36, %c0_37] : memref<1x3x128xf32, #tpu.memory_space<vmem>>, vector<1x3x128xf32>
      tpu.vector_store %arg6[%c0_35, %c0_36, %c0_37], %48 {strides = array<i32>} : memref<1x3x128xf32, #tpu.memory_space<vmem>>, vector<1x3x128xf32>,
    } else {
    }
    %3 = tpu.iota {dimensions = array<i32: 1>} : vector<1x128xi32>
    %c1_i32 = arith.constant 1 : i32
    %4 = arith.muli %arg0, %c1_i32 : i32
    %5 = arith.addi %4, %arg1 : i32
    %c128_i32 = arith.constant 128 : i32
    %6 = arith.muli %5, %c128_i32 : i32
    %7 = vector.broadcast %6 : i32 to vector<1x128xi32>
    %8 = arith.addi %7, %3 : vector<1x128xi32>
    %c10_i32 = arith.constant 10 : i32
    %9 = vector.broadcast %c10_i32 : i32 to vector<1x128xi32>
    %10 = arith.cmpi slt, %8, %9 : vector<1x128xi32>
    %c0 = arith.constant 0 : index
    %c0_1 = arith.constant 0 : index
    %11 = vector.load %arg2[%c0, %c0_1] : memref<3x128xf32, #tpu.memory_space<vmem>>, vector<3x128xf32>
    %c0_2 = arith.constant 0 : index
    %c0_3 = arith.constant 0 : index
    %12 = vector.load %arg3[%c0_2, %c0_3] : memref<1x128xi32, #tpu.memory_space<vmem>>, vector<1x128xi32>
    %cst = arith.constant dense<0xFF800000> : vector<128xf32>
    %13 = vector.multi_reduction <maximumf>, %11, %cst [0] : vector<3x128xf32> to vector<128xf32>
    %14 = vector.shape_cast %13 : vector<128xf32> to vector<1x128xf32>
    %15 = vector.broadcast %14 : vector<1x128xf32> to vector<3x128xf32>
    %16 = arith.subf %11, %15 : vector<3x128xf32>
    %17 = math.exp %16 : vector<3x128xf32>
    %cst_4 = arith.constant dense<0.000000e+00> : vector<128xf32>
    %18 = vector.multi_reduction <add>, %17, %cst_4 [0] : vector<3x128xf32> to vector<128xf32>
    %19 = vector.shape_cast %18 : vector<128xf32> to vector<1x128xf32>
    %20 = tpu.reciprocal %19 : vector<1x128xf32> -> vector<1x128xf32>
    %cst_5 = arith.constant 0.000000e+00 : f32
    %21 = vector.broadcast %cst_5 : f32 to vector<1x128xf32>
    %22 = arith.select %10, %20, %21 : vector<1x128xi1>, vector<1x128xf32>
    %23 = vector.broadcast %22 : vector<1x128xf32> to vector<3x128xf32>
    %24 = arith.mulf %17, %23 : vector<3x128xf32>
    %25 = tpu.iota {dimensions = array<i32: 0>} : vector<3x128xi32>
    %26 = vector.broadcast %12 : vector<1x128xi32> to vector<3x128xi32>
    %27 = arith.cmpi eq, %25, %26 : vector<3x128xi32>
    %cst_6 = arith.constant 1.000000e+00 : f32
    %cst_7 = arith.constant 0.000000e+00 : f32
    %28 = vector.broadcast %cst_6 : f32 to vector<3x128xf32>
    %29 = vector.broadcast %cst_7 : f32 to vector<3x128xf32>
    %30 = arith.select %27, %28, %29 : vector<3x128xi1>, vector<3x128xf32>
    %c0_8 = arith.constant 0 : index
    %c0_9 = arith.constant 0 : index
    %c0_10 = arith.constant 0 : index
    %31 = vector.load %arg4[%c0_8, %c0_9, %c0_10] : memref<1x3x128xf32, #tpu.memory_space<vmem>>, vector<1x3x128xf32>
    %32 = arith.mulf %30, %24 : vector<3x128xf32>
    %33 = vector.shape_cast %32 : vector<3x128xf32> to vector<1x3x128xf32>
    %34 = arith.addf %31, %33 : vector<1x3x128xf32>
    %c0_11 = arith.constant 0 : index
    %c0_12 = arith.constant 0 : index
    %c0_13 = arith.constant 0 : index
    %35 = vector.load %arg4[%c0_11, %c0_12, %c0_13] : memref<1x3x128xf32, #tpu.memory_space<vmem>>, vector<1x3x128xf32>
    tpu.vector_store %arg4[%c0_11, %c0_12, %c0_13], %34 {strides = array<i32>} : memref<1x3x128xf32, #tpu.memory_space<vmem>>, vector<1x3x128xf32>,
    %c0_14 = arith.constant 0 : index
    %c0_15 = arith.constant 0 : index
    %c0_16 = arith.constant 0 : index
    %36 = vector.load %arg5[%c0_14, %c0_15, %c0_16] : memref<1x3x128xf32, #tpu.memory_space<vmem>>, vector<1x3x128xf32>
    %37 = vector.shape_cast %24 : vector<3x128xf32> to vector<1x3x128xf32>
    %38 = arith.addf %36, %37 : vector<1x3x128xf32>
    %c0_17 = arith.constant 0 : index
    %c0_18 = arith.constant 0 : index
    %c0_19 = arith.constant 0 : index
    %39 = vector.load %arg5[%c0_17, %c0_18, %c0_19] : memref<1x3x128xf32, #tpu.memory_space<vmem>>, vector<1x3x128xf32>
    tpu.vector_store %arg5[%c0_17, %c0_18, %c0_19], %38 {strides = array<i32>} : memref<1x3x128xf32, #tpu.memory_space<vmem>>, vector<1x3x128xf32>,
    %c0_20 = arith.constant 0 : index
    %c0_21 = arith.constant 0 : index
    %c0_22 = arith.constant 0 : index
    %40 = vector.load %arg6[%c0_20, %c0_21, %c0_22] : memref<1x3x128xf32, #tpu.memory_space<vmem>>, vector<1x3x128xf32>
    %41 = vector.shape_cast %30 : vector<3x128xf32> to vector<1x3x128xf32>
    %42 = arith.addf %40, %41 : vector<1x3x128xf32>
    %c0_23 = arith.constant 0 : index
    %c0_24 = arith.constant 0 : index
    %c0_25 = arith.constant 0 : index
    %43 = vector.load %arg6[%c0_23, %c0_24, %c0_25] : memref<1x3x128xf32, #tpu.memory_space<vmem>>, vector<1x3x128xf32>
    tpu.vector_store %arg6[%c0_23, %c0_24, %c0_25], %42 {strides = array<i32>} : memref<1x3x128xf32, #tpu.memory_space<vmem>>, vector<1x3x128xf32>,
    return
  }
  func.func @transform_0(%arg0: i32, %arg1: i32) -> (i32, i32) {
    %c1_i32 = arith.constant 1 : i32
    %0 = arith.muli %arg0, %c1_i32 : i32
    %1 = arith.addi %0, %arg1 : i32
    %c0_i32 = arith.constant 0 : i32
    %c0_i32_0 = arith.constant 0 : i32
    return %c0_i32, %1 : i32, i32
  }
  func.func @transform_1(%arg0: i32, %arg1: i32) -> (i32, i32) {
    %c1_i32 = arith.constant 1 : i32
    %0 = arith.muli %arg0, %c1_i32 : i32
    %1 = arith.addi %0, %arg1 : i32
    %c0_i32 = arith.constant 0 : i32
    %c0_i32_0 = arith.constant 0 : i32
    return %c0_i32, %1 : i32, i32
  }
  func.func @transform_2(%arg0: i32, %arg1: i32) -> (i32, i32, i32) {
    %c0_i32 = arith.constant 0 : i32
    %c0_i32_0 = arith.constant 0 : i32
    %c0_i32_1 = arith.constant 0 : i32
    return %arg0, %c0_i32, %c0_i32_0 : i32, i32, i32
  }
  func.func @transform_3(%arg0: i32, %arg1: i32) -> (i32, i32, i32) {
    %c0_i32 = arith.constant 0 : i32
    %c0_i32_0 = arith.constant 0 : i32
    %c0_i32_1 = arith.constant 0 : i32
    return %arg0, %c0_i32, %c0_i32_0 : i32, i32, i32
  }
  func.func @transform_4(%arg0: i32, %arg1: i32) -> (i32, i32, i32) {
    %c0_i32 = arith.constant 0 : i32
    %c0_i32_0 = arith.constant 0 : i32
    %c0_i32_1 = arith.constant 0 : i32
    return %arg0, %c0_i32, %c0_i32_0 : i32, i32, i32
  }
}

</mosaic_0001>

<llo_original>
// kernel: tpu_custom_call.1
$region0: #{tpu_custom_call.1}
  #allocation0 [shape = 'u32[]', space=smem, size = 0x4, offset = 0x4, fixed_abs, tag = 'smem constant byte address 0x4 - core index']
  #allocation1 [shape = 'u32[72,128]{1,0:T(1,128)}', space=vmem, size = 0x9000, scoped, tag = 'internal scratch']
  %s0 = inlined_call_operand.hbm [shape: f32[3,256], index: 0, kind: input, shape index: {}]
  %s1 = inlined_call_operand.hbm [shape: s32[1,256], index: 1, kind: input, shape index: {}]
  %s2 = inlined_call_operand.vmem [shape: f32[2,3,128], index: 2, kind: output, shape index: {0}]
  %s3 = inlined_call_operand.vmem [shape: f32[2,3,128], index: 3, kind: output, shape index: {1}]
  %s4 = inlined_call_operand.vmem [shape: f32[2,3,128], index: 4, kind: output, shape index: {2}]
  %5 = xla_tuple %s2, %s3, %s4
  %s6 = sld [smem:[#allocation0]]
  $region69: #{tpu_custom_call.1} parent=0
    _
  %s8 = ssub.s32 1, %s6
  %s9 = scalar_select 0, %s8, %s6
  $region1: #{tpu_custom_call.1} parent=0
    #allocation2 [shape = 'u8[4096]{0}', space=vmem, size = 0x1000, scoped, tag = 'input window, operand 0']
    #allocation3 [shape = 's32[2]{0}', space=sflag, size = 0x8, scoped, tag = 'scoped memory for tpu_custom_call.1']
    #allocation4 [shape = 'u8[1024]{0}', space=vmem, size = 0x400, scoped, tag = 'input window, operand 1']
    #allocation5 [shape = 's32[2]{0}', space=sflag, size = 0x8, scoped, tag = 'scoped memory for tpu_custom_call.1']
    %10 = vsyncpa [#allocation3], 0
    %s11 = scalar_lea.sflag [#allocation3], 1
    %12 = vsyncpa %s11, 0
    %13 = vsyncpa [#allocation5], 0
    %s14 = scalar_lea.sflag [#allocation5], 1
    %15 = vsyncpa %s14, 0
    loop: start=0, step=1, limit=4
    $region2: #{tpu_custom_call.1} parent=1 // loop_pre_header
      _
    $region3: #{tpu_custom_call.1} parent=1 // loop_header
      %s17 = sphi 0, %s21
      %p18 = scmp.ge.s32.totalorder %s17, 4
      %s24 = sphi 0, %s36
      %s25 = sphi 0, %s32
      %s26 = sphi 0, %s24
      %s27 = sphi 0, %s25
      %s28 = sphi 0, %s26
      %s29 = sphi 0, %s27
      %s41 = sphi 0, %s43
      %s44 = sphi 0, %s41
      %s45 = sphi 0, %s44
      %s61 = sphi 0, %s45
      %s69 = sphi 0, %s71
      %s72 = sphi 0, %s69
      %s73 = sphi 0, %s72
      %s89 = sphi 0, %s73
      %s95 = sphi 0, %s97
      %s98 = sphi 0, %s95
      %s99 = sphi 0, %s98
      %s115 = sphi 0, %s99
      %s121 = sphi 0, %s123
      %s124 = sphi 0, %s121
      %s125 = sphi 0, %s124
      %s141 = sphi 0, %s125
      %s147 = sphi 0, %s149
      %s150 = sphi 0, %s147
      %s151 = sphi 0, %s150
      %s167 = sphi 0, %s151
    $region4: #{tpu_custom_call.1} parent=1 // loop_header_branch
      %20 = sbr.rel (%p18) target = $region8
    $region5: #{tpu_custom_call.1} parent=1 // loop_body
      %s22 = ssub.s32 %s17, 1
      %s23 = ssub.s32 %s17, 2
      %s30 = sadd.s32 1, %s25
      %p31 = scmp.ge.s32.totalorder %s30, 1
      %s32 = scalar_select %p31, 0, %s30
      %s33 = sadd.s32 1, %s24
      %s34 = scalar_select %p31, %s33, %s24
      %p35 = scmp.ge.s32.totalorder %s34, 2
      %s36 = scalar_select %p35, 0, %s34
      %s37 = sadd.s32 %s24, %s25
      %s38 = sadd.s32 %s36, %s32
      %s39 = ssub.s32 %s37, %s38
      %p40 = scmp.eq.s32.totalorder %s39, 0
      %s42 = sadd.s32 %s41, 1
      %s43 = scalar_select %p40, %s41, %s42
      %p46 = pneg %p40
      %p47 = scmp.eq.s32.totalorder %s17, 1
      %p48 = por %p46, %p47
      %p49 = scmp.ne.s32.totalorder %s41, %s44
      %p50 = scmp.eq.s32.totalorder %s17, 0
      %p51 = por %p49, %p50
      %p52 = scmp.ne.s32.totalorder %s41, %s44
      %p53 = scmp.eq.s32.totalorder %s22, 1
      %p54 = por %p52, %p53
      %p55 = scmp.ne.s32.totalorder %s44, %s45
      %p56 = scmp.eq.s32.totalorder %s22, 0
      %p57 = por %p55, %p56
      %p58 = scmp.ne.s32.totalorder %s44, %s45
      %p59 = scmp.eq.s32.totalorder %s23, 1
      %p60 = por %p58, %p59
      %p62 = scmp.ne.s32.totalorder %s45, %s61
      %p63 = scmp.eq.s32.totalorder %s23, 0
      %p64 = por %p62, %p63
      %s65 = sadd.s32 %s24, %s25
      %s66 = sadd.s32 %s36, %s32
      %s67 = ssub.s32 %s65, %s66
      %p68 = scmp.eq.s32.totalorder %s67, 0
      %s70 = sadd.s32 %s69, 1
      %s71 = scalar_select %p68, %s69, %s70
      %p74 = pneg %p68
      %p75 = scmp.eq.s32.totalorder %s17, 1
      %p76 = por %p74, %p75
      %p77 = scmp.ne.s32.totalorder %s69, %s72
      %p78 = scmp.eq.s32.totalorder %s17, 0
      %p79 = por %p77, %p78
      %p80 = scmp.ne.s32.totalorder %s69, %s72
      %p81 = scmp.eq.s32.totalorder %s22, 1
      %p82 = por %p80, %p81
      %p83 = scmp.ne.s32.totalorder %s72, %s73
      %p84 = scmp.eq.s32.totalorder %s22, 0
      %p85 = por %p83, %p84
      %p86 = scmp.ne.s32.totalorder %s72, %s73
      %p87 = scmp.eq.s32.totalorder %s23, 1
      %p88 = por %p86, %p87
      %p90 = scmp.ne.s32.totalorder %s73, %s89
      %p91 = scmp.eq.s32.totalorder %s23, 0
      %p92 = por %p90, %p91
      %s93 = ssub.s32 %s24, %s36
      %p94 = scmp.eq.s32.totalorder %s93, 0
      %s96 = sadd.s32 %s95, 1
      %s97 = scalar_select %p94, %s95, %s96
      %p100 = pneg %p94
      %p101 = scmp.eq.s32.totalorder %s17, 1
      %p102 = por %p100, %p101
      %p103 = scmp.ne.s32.totalorder %s95, %s98
      %p104 = scmp.eq.s32.totalorder %s17, 0
      %p105 = por %p103, %p104
      %p106 = scmp.ne.s32.totalorder %s95, %s98
      %p107 = scmp.eq.s32.totalorder %s22, 1
      %p108 = por %p106, %p107
      %p109 = scmp.ne.s32.totalorder %s98, %s99
      %p110 = scmp.eq.s32.totalorder %s22, 0
      %p111 = por %p109, %p110
      %p112 = scmp.ne.s32.totalorder %s98, %s99
      %p113 = scmp.eq.s32.totalorder %s23, 1
      %p114 = por %p112, %p113
      %p116 = scmp.ne.s32.totalorder %s99, %s115
      %p117 = scmp.eq.s32.totalorder %s23, 0
      %p118 = por %p116, %p117
      %s119 = ssub.s32 %s24, %s36
      %p120 = scmp.eq.s32.totalorder %s119, 0
      %s122 = sadd.s32 %s121, 1
      %s123 = scalar_select %p120, %s121, %s122
      %p126 = pneg %p120
      %p127 = scmp.eq.s32.totalorder %s17, 1
      %p128 = por %p126, %p127
      %p129 = scmp.ne.s32.totalorder %s121, %s124
      %p130 = scmp.eq.s32.totalorder %s17, 0
      %p131 = por %p129, %p130
      %p132 = scmp.ne.s32.totalorder %s121, %s124
      %p133 = scmp.eq.s32.totalorder %s22, 1
      %p134 = por %p132, %p133
      %p135 = scmp.ne.s32.totalorder %s124, %s125
      %p136 = scmp.eq.s32.totalorder %s22, 0
      %p137 = por %p135, %p136
      %p138 = scmp.ne.s32.totalorder %s124, %s125
      %p139 = scmp.eq.s32.totalorder %s23, 1
      %p140 = por %p138, %p139
      %p142 = scmp.ne.s32.totalorder %s125, %s141
      %p143 = scmp.eq.s32.totalorder %s23, 0
      %p144 = por %p142, %p143
      %s145 = ssub.s32 %s24, %s36
      %p146 = scmp.eq.s32.totalorder %s145, 0
      %s148 = sadd.s32 %s147, 1
      %s149 = scalar_select %p146, %s147, %s148
      %p152 = pneg %p146
      %p153 = scmp.eq.s32.totalorder %s17, 1
      %p154 = por %p152, %p153
      %p155 = scmp.ne.s32.totalorder %s147, %s150
      %p156 = scmp.eq.s32.totalorder %s17, 0
      %p157 = por %p155, %p156
      %p158 = scmp.ne.s32.totalorder %s147, %s150
      %p159 = scmp.eq.s32.totalorder %s22, 1
      %p160 = por %p158, %p159
      %p161 = scmp.ne.s32.totalorder %s150, %s151
      %p162 = scmp.eq.s32.totalorder %s22, 0
      %p163 = por %p161, %p162
      %p164 = scmp.ne.s32.totalorder %s150, %s151
      %p165 = scmp.eq.s32.totalorder %s23, 1
      %p166 = por %p164, %p165
      %p168 = scmp.ne.s32.totalorder %s151, %s167
      %p169 = scmp.eq.s32.totalorder %s23, 0
      %p170 = por %p168, %p169
      %p171 = scmp.le.s32.totalorder 1, %s17
      %p172 = scmp.lt.s32.totalorder %s17, 3
      %p173 = pnand %p171, %p172
      %p174 = pneg %p173
      // Predicated region
      $region9: #{tpu_custom_call.1} parent=5 // pred_check
        _
      $region10: #{tpu_custom_call.1} parent=5 // pred_check_branch
        %176 = sbr.rel (%p173) target = $region12
      $region11: #{tpu_custom_call.1} parent=5 // pred_region
        %s177 = ssub.s32 %s17, 1
      $region12: #{tpu_custom_call.1} parent=5 // pred_fallthru
        _
      %p178 = scmp.lt.s32.totalorder %s17, 2
      // Predicated region
      $region13: #{tpu_custom_call.1} parent=5 // pred_check
        %p179 = pneg %p178
      $region14: #{tpu_custom_call.1} parent=5 // pred_check_branch
        %181 = sbr.rel (%p179) target = $region16
      $region15: #{tpu_custom_call.1} parent=5 // pred_region
        // Predicated region
        $region17: #{tpu_custom_call.1} parent=15 // pred_check
          %p182 = pneg %p51
        $region18: #{tpu_custom_call.1} parent=15 // pred_check_branch
          %184 = sbr.rel (%p182) target = $region20
        $region19: #{tpu_custom_call.1} parent=15 // pred_region
          %s185 = sand.u32 %s41, 1
          %s186 = scalar_lea.sflag [#allocation3], %s185
          %s187 = sand.u32 %s41, 1
          %s188 = smul.addr %s187, 4
          %s189 = scalar_lea.vmem [#allocation2], %s188
          %s190 = sadd.s32 %s24, %s25
          %192 = vsyncadd %s186, 0
          %s193 = smul.addr %s190, 4
          %s194 = scalar_lea.hbm %s0, %s193
          %s196 = sshll.u32 %s194, 4
          %s197 = int_to_ptr.hbm [resolvable:$true] %s196
          %s198 = sshll.u32 %s189, 4
          %s199 = int_to_ptr.vmem [resolvable:$true] %s198
          %201 = dma.hbm_to_vmem [thread:$0]  %s197, 64, %s199, %s186
        $region20: #{tpu_custom_call.1} parent=15 // pred_fallthru
          _
        // Predicated region
        $region21: #{tpu_custom_call.1} parent=15 // pred_check
          %p202 = pneg %p79
        $region22: #{tpu_custom_call.1} parent=15 // pred_check_branch
          %204 = sbr.rel (%p202) target = $region24
        $region23: #{tpu_custom_call.1} parent=15 // pred_region
          %s205 = sand.u32 %s69, 1
          %s206 = scalar_lea.sflag [#allocation5], %s205
          %s207 = sand.u32 %s69, 1
          %s208 = scalar_lea.vmem [#allocation4], %s207
          %s209 = sadd.s32 %s24, %s25
          %211 = vsyncadd %s206, 0
          %s212 = scalar_lea.hbm %s1, %s209
          %s214 = sshll.u32 %s212, 4
          %s215 = int_to_ptr.hbm [resolvable:$true] %s214
          %s216 = sshll.u32 %s208, 4
          %s217 = int_to_ptr.vmem [resolvable:$true] %s216
          %219 = dma.hbm_to_vmem [thread:$0]  %s215, 16, %s217, %s206
        $region24: #{tpu_custom_call.1} parent=15 // pred_fallthru
          _
      $region16: #{tpu_custom_call.1} parent=5 // pred_fallthru
        _
      %p220 = scmp.le.s32.totalorder 1, %s17
      %p221 = scmp.lt.s32.totalorder %s17, 3
      %p222 = pnand %p220, %p221
      %p223 = pneg %p222
      // Predicated region
      $region25: #{tpu_custom_call.1} parent=5 // pred_check
        _
      $region26: #{tpu_custom_call.1} parent=5 // pred_check_branch
        %225 = sbr.rel (%p222) target = $region28
      $region27: #{tpu_custom_call.1} parent=5 // pred_region
        %s226 = ssub.s32 %s17, 1
        %s227 = sand.u32 %s44, 1
        %s228 = scalar_lea.sflag [#allocation3], %s227
        %s229 = sand.u32 %s44, 1
        %s230 = smul.addr %s229, 4
        %s231 = scalar_lea.vmem [#allocation2], %s230
        // Predicated region
        $region29: #{tpu_custom_call.1} parent=27 // pred_check
          %p232 = pneg %p57
        $region30: #{tpu_custom_call.1} parent=27 // pred_check_branch
          %234 = sbr.rel (%p232) target = $region32
        $region31: #{tpu_custom_call.1} parent=27 // pred_region
          %236 = dma.done %s228, 64
        $region32: #{tpu_custom_call.1} parent=27 // pred_fallthru
          _
        %s237 = sand.u32 %s72, 1
        %s238 = scalar_lea.sflag [#allocation5], %s237
        %s239 = sand.u32 %s72, 1
        %s240 = scalar_lea.vmem [#allocation4], %s239
        // Predicated region
        $region33: #{tpu_custom_call.1} parent=27 // pred_check
          %p241 = pneg %p85
        $region34: #{tpu_custom_call.1} parent=27 // pred_check_branch
          %243 = sbr.rel (%p241) target = $region36
        $region35: #{tpu_custom_call.1} parent=27 // pred_region
          %245 = dma.done %s238, 16
        $region36: #{tpu_custom_call.1} parent=27 // pred_fallthru
          _
        %s246 = sand.u32 %s44, 1
        %s247 = scalar_lea.sflag [#allocation3], %s246
        %s248 = sand.u32 %s44, 1
        %s249 = smul.addr %s248, 4
        %s250 = scalar_lea.vmem [#allocation2], %s249
        %p251 = pneg %p57
        %p252 = pneg %p54
        %s253 = sand.u32 %s72, 1
        %s254 = scalar_lea.sflag [#allocation5], %s253
        %s255 = sand.u32 %s72, 1
        %s256 = scalar_lea.vmem [#allocation4], %s255
        %p257 = pneg %p85
        %p258 = pneg %p82
        %p259 = pneg %p111
        %p260 = pneg %p108
        %p261 = scmp.lt.s32.totalorder %s26, 1
        %s262 = scalar_select %p261, %s26, 1
        %s263 = smul.addr %s262, 4
        %s264 = scalar_lea.vmem %s2, %s263
        %p265 = pneg %p137
        %p266 = pneg %p134
        %p267 = scmp.lt.s32.totalorder %s26, 1
        %s268 = scalar_select %p267, %s26, 1
        %s269 = smul.addr %s268, 4
        %s270 = scalar_lea.vmem %s3, %s269
        %p271 = pneg %p163
        %p272 = pneg %p160
        %p273 = scmp.lt.s32.totalorder %s26, 1
        %s274 = scalar_select %p273, %s26, 1
        %s275 = smul.addr %s274, 4
        %s276 = scalar_lea.vmem %s4, %s275
        %s277 = sadd.s32 %s26, %s27
        %s278 = sadd.s32 %s26, %s27
        %p279 = scmp.lt.s32.totalorder %s26, 1
        %s280 = scalar_select %p279, %s26, 1
        %s281 = smul.addr %s280, 4
        %s282 = scalar_lea.vmem %s2, %s281
        %p283 = scmp.lt.s32.totalorder %s26, 1
        %s284 = scalar_select %p283, %s26, 1
        %s285 = smul.addr %s284, 4
        %s286 = scalar_lea.vmem %s3, %s285
        %p287 = scmp.lt.s32.totalorder %s26, 1
        %s288 = scalar_select %p287, %s26, 1
        %s289 = smul.addr %s288, 4
        %s290 = scalar_lea.vmem %s4, %s289
        %p291 = scmp.eq.s32.totalorder %s27, 0
        // Predicated region
        $region37: #{tpu_custom_call.1} parent=27 // pred_check
          %p292 = pneg %p291
        $region38: #{tpu_custom_call.1} parent=27 // pred_check_branch
          %294 = sbr.rel (%p292) target = $region40
        $region39: #{tpu_custom_call.1} parent=27 // pred_region
          %295 = vst [vmem:[%s282] sm:$0x7] 0.0
          %296 = vst [vmem:[%s286] sm:$0x7] 0.0
          %297 = vst [vmem:[%s290] sm:$0x7] 0.0
        $region40: #{tpu_custom_call.1} parent=27 // pred_fallthru
          _
        %v298 = vlaneseq
        %v299 = vand.u32 %v298, 127
        %s300 = sadd.s32 %s26, %s27
        %s301 = smul.u32 %s300, 128
        %v302 = vstv %s301
        %v303 = vadd.s32 %v302, %v299
        %vm304 = vcmp.lt.s32.totalorder %v303, 10
        %v305 = vld [vmem:[%s231] sm:$0x7]
        %v306 = vld [vmem:[%s240] sm:$0x1]
        %vm307 = vcmask 1042432
        %v308 = vsel %vm307, %v305, -inf
        %v309 = vrot.slane %v308, 4
        %v310 = vmax.f32 %v308, %v309
        %v311 = vrot.slane %v310, 2
        %v312 = vmax.f32 %v310, %v311
        %v313 = vrot.slane %v312, 1
        %v314 = vmax.f32 %v312, %v313
        %v315 = vsub.f32 %v305, %v314
        %v316 = vmul.f32 %v315, 1.442695
        %v317 = vpow.pop %v316
        %v318 = vsel %vm307, %v317, 0.0
        %v319 = vrot.slane %v318, 4
        %v320 = vadd.f32 %v318, %v319
        %v321 = vrot.slane %v320, 2
        %v322 = vadd.f32 %v320, %v321
        %v323 = vrot.slane %v322, 1
        %v324 = vadd.f32 %v322, %v323
        %v325 = vrcp.pop %v324
        %v326 = vmul.f32 %v324, %v325
        %v327 = vsub.f32 1.0, %v326
        %v328 = vmul.f32 %v325, %v327
        %v329 = vadd.f32 %v325, %v328
        %vm330 = vweird.f32 %v324
        %vm331 = vweird.f32 %v325
        %vm332 = vmor %vm330, %vm331
        %v333 = vsel %vm332, %v325, %v329
        %v334 = vand.u32 2147483647, %v324
        %vm335 = vcmp.eq.f32.partialorder %v334, 8.507059e+37
        %v336 = vand.u32 %v324, 2147483648
        %v337 = vor.u32 1.1754944e-38, %v336
        %v338 = vsel %vm335, %v337, %v333
        %v339 = vsel %vm304, %v338, 0.0
        %v340 = vmul.f32 %v317, %v339
        %v341 = vlaneseq
        %v342 = vshrl.u32 %v341, 7
        %v343 = vperm.slane %v306, 0
        %vm344 = vcmp.eq.s32.totalorder %v342, %v343
        %v345 = vsel %vm344, 1.0, 0.0
        %v346 = vld [vmem:[%s282] sm:$0x7]
        %v347 = vmul.f32 %v345, %v340
        %v348 = vadd.f32 %v346, %v347
        %349 = vst [vmem:[%s282] sm:$0x7] %v348
        %v350 = vld [vmem:[%s286] sm:$0x7]
        %v351 = vadd.f32 %v350, %v340
        %352 = vst [vmem:[%s286] sm:$0x7] %v351
        %v353 = vld [vmem:[%s290] sm:$0x7]
        %v354 = vadd.f32 %v353, %v345
        %355 = vst [vmem:[%s290] sm:$0x7] %v354
        %p356 = scmp.lt.s32.totalorder %s26, 1
        %s357 = scalar_select %p356, %s26, 1
        %s358 = smul.addr %s357, 4
        %s359 = scalar_lea.vmem %s2, %s358
        %p360 = scmp.lt.s32.totalorder %s26, 1
        %s361 = scalar_select %p360, %s26, 1
        %s362 = smul.addr %s361, 4
        %s363 = scalar_lea.vmem %s3, %s362
        %p364 = scmp.lt.s32.totalorder %s26, 1
        %s365 = scalar_select %p364, %s26, 1
        %s366 = smul.addr %s365, 4
        %s367 = scalar_lea.vmem %s4, %s366
        // Predicated region
        $region41: #{tpu_custom_call.1} parent=27 // pred_check
          %p368 = pneg %p108
        $region42: #{tpu_custom_call.1} parent=27 // pred_check_branch
          %370 = sbr.rel (%p368) target = $region44
        $region43: #{tpu_custom_call.1} parent=27 // pred_region
          _
        $region44: #{tpu_custom_call.1} parent=27 // pred_fallthru
          _
        // Predicated region
        $region45: #{tpu_custom_call.1} parent=27 // pred_check
          %p371 = pneg %p134
        $region46: #{tpu_custom_call.1} parent=27 // pred_check_branch
          %373 = sbr.rel (%p371) target = $region48
        $region47: #{tpu_custom_call.1} parent=27 // pred_region
          _
        $region48: #{tpu_custom_call.1} parent=27 // pred_fallthru
          _
        // Predicated region
        $region49: #{tpu_custom_call.1} parent=27 // pred_check
          %p374 = pneg %p160
        $region50: #{tpu_custom_call.1} parent=27 // pred_check_branch
          %376 = sbr.rel (%p374) target = $region52
        $region51: #{tpu_custom_call.1} parent=27 // pred_region
          _
        $region52: #{tpu_custom_call.1} parent=27 // pred_fallthru
          _
      $region28: #{tpu_custom_call.1} parent=5 // pred_fallthru
        _
      %p377 = scmp.le.s32.totalorder 2, %s17
      // Predicated region
      $region53: #{tpu_custom_call.1} parent=5 // pred_check
        %p378 = pneg %p377
      $region54: #{tpu_custom_call.1} parent=5 // pred_check_branch
        %380 = sbr.rel (%p378) target = $region56
      $region55: #{tpu_custom_call.1} parent=5 // pred_region
        %s381 = ssub.s32 %s17, 2
        // Predicated region
        $region57: #{tpu_custom_call.1} parent=55 // pred_check
          %p382 = pneg %p114
        $region58: #{tpu_custom_call.1} parent=55 // pred_check_branch
          %384 = sbr.rel (%p382) target = $region60
        $region59: #{tpu_custom_call.1} parent=55 // pred_region
          %p385 = scmp.lt.s32.totalorder %s28, 1
          %s386 = scalar_select %p385, %s28, 1
          %s387 = smul.addr %s386, 4
          %s388 = scalar_lea.vmem %s2, %s387
        $region60: #{tpu_custom_call.1} parent=55 // pred_fallthru
          _
        // Predicated region
        $region61: #{tpu_custom_call.1} parent=55 // pred_check
          %p389 = pneg %p140
        $region62: #{tpu_custom_call.1} parent=55 // pred_check_branch
          %391 = sbr.rel (%p389) target = $region64
        $region63: #{tpu_custom_call.1} parent=55 // pred_region
          %p392 = scmp.lt.s32.totalorder %s28, 1
          %s393 = scalar_select %p392, %s28, 1
          %s394 = smul.addr %s393, 4
          %s395 = scalar_lea.vmem %s3, %s394
        $region64: #{tpu_custom_call.1} parent=55 // pred_fallthru
          _
        // Predicated region
        $region65: #{tpu_custom_call.1} parent=55 // pred_check
          %p396 = pneg %p166
        $region66: #{tpu_custom_call.1} parent=55 // pred_check_branch
          %398 = sbr.rel (%p396) target = $region68
        $region67: #{tpu_custom_call.1} parent=55 // pred_region
          %p399 = scmp.lt.s32.totalorder %s28, 1
          %s400 = scalar_select %p399, %s28, 1
          %s401 = smul.addr %s400, 4
          %s402 = scalar_lea.vmem %s4, %s401
        $region68: #{tpu_custom_call.1} parent=55 // pred_fallthru
          _
      $region56: #{tpu_custom_call.1} parent=5 // pred_fallthru
        _
    $region6: #{tpu_custom_call.1} parent=1 // loop_footer
      %s21 = sadd.s32 1, %s17
    $region7: #{tpu_custom_call.1} parent=1 // loop_footer_branch
      %16 = sbr.rel target = $region3
    $region8: #{tpu_custom_call.1} parent=1 // loop_exit
      _
    %403 = vsyncpa [#allocation3], 1
    %s404 = scalar_lea.sflag [#allocation3], 1
    %405 = vsyncpa %s404, 1
    %406 = vsyncpa [#allocation5], 1
    %s407 = scalar_lea.sflag [#allocation5], 1
    %408 = vsyncpa %s407, 1

</llo_original>
